<compile_context>
chip_gen: v7x
topology: tpu7x:2x2x1
jax: 0.10.0
libtpu: 0.0.40
codegen_flags: <defaults>
</compile_context>

<pallas_src>
import math

import jax
import jax.numpy as jnp
from jax import lax
from jax.experimental import pallas as pl
from jax.experimental.pallas import tpu as pltpu


# --------------------------------------------------------------------------- #
# Kernel                                                                      #
# --------------------------------------------------------------------------- #
def _conv1x1_kernel(w_ref, x_ref, b_ref, o_ref):
    """Pointwise conv as per-image MXU matmuls, NCHW-native.

    w_ref: (C_out, C_in)    weight matrix, resident across the grid
    x_ref: (TN, C_in, THW)  activation tile: TN images, spatial on the lane axis
    b_ref: (C_out, 1)       f32 bias column, resident
    o_ref: (TN, C_out, THW) output tile (lane axis = spatial -> lane-dense stores)
    """
    w = w_ref[...]
    tn, c_out, thw = o_ref.shape
    # Hoisted once per grid step (JAX does not CSE broadcast_in_dim).
    bias_tile = jnp.broadcast_to(b_ref[...], (c_out, thw))

    def body(i, carry):
        acc = jnp.dot(w, x_ref[i], preferred_element_type=jnp.float32)
        o_ref[i] = (acc + bias_tile).astype(o_ref.dtype)
        return carry

    # fori_loop (not a Python unroll) bounds live ranges so large batch tiles
    # don't blow past the 64-vreg file and spill into the store slot.
    lax.fori_loop(0, tn, body, 0)


# --------------------------------------------------------------------------- #
# Device-aware tuning                                                         #
# --------------------------------------------------------------------------- #
def _device_tuning():
    """Returns (multi_tensorcore, target_block_bytes) with safe fallbacks."""
    multi_tc = False
    block_bytes = 4 << 20
    try:
        kind = jax.devices()[0].device_kind.lower()
    except Exception:  # pragma: no cover - conservative fallback
        return multi_tc, block_bytes

    # Multi-TensorCore chips (grid shards across cores with "parallel" axes).
    if ("v4" in kind) or ("v5p" in kind) or ("7x" in kind) or ("v7" in kind):
        multi_tc = True

    if ("v5e" in kind) or ("v5 lite" in kind) or ("v5lite" in kind):
        block_bytes = 3 << 20      # v5e: stay modest; vmem_limit is bumped explicitly
    elif "v6" in kind:
        block_bytes = 8 << 20      # v6e: 128 MiB VMEM, big blocks hit the roofline knee
    elif multi_tc and (("7x" in kind) or ("v7" in kind)):
        block_bytes = 6 << 20      # v7x: 64 MiB VMEM per TensorCore
    return multi_tc, block_bytes


# --------------------------------------------------------------------------- #
# Wrapper                                                                     #
# --------------------------------------------------------------------------- #
def conv1x1_nchw(x_nchw, weight_oihw, bias, *, compute_dtype=jnp.bfloat16,
                 out_dtype=None, batch_tile=None, target_block_bytes=None):
    """1x1 conv over NCHW input via a Pallas TPU matmul kernel.

    x_nchw:      (N, C_in, H, W)
    weight_oihw: (C_out, C_in, 1, 1)  -- PyTorch Conv2d weight layout
    bias:        (C_out,)
    compute_dtype: dtype for activations/weights fed to the MXU (default bf16;
                   accumulation + bias add stay f32).  Pass jnp.float32 for an
                   exact-f32 path.
    out_dtype:   output dtype (default: x dtype).
    returns:     (N, C_out, H, W)
    """
    N, C_in, H, W = x_nchw.shape
    C_out = weight_oihw.shape[0]
    HW = H * W
    if out_dtype is None:
        out_dtype = x_nchw.dtype

    multi_tc, auto_block_bytes = _device_tuning()
    if target_block_bytes is None:
        target_block_bytes = auto_block_bytes

    # Free reshapes only (merge contiguous trailing dims): no transposes, so no
    # extra full-tensor HBM round-trips around the kernel.
    x3 = x_nchw.reshape(N, C_in, HW)
    w = weight_oihw.reshape(C_out, C_in)
    b = bias.reshape(C_out, 1).astype(jnp.float32)

    if compute_dtype is not None:
        if x3.dtype != compute_dtype:
            x3 = x3.astype(compute_dtype)
        if w.dtype != compute_dtype:
            w = w.astype(compute_dtype)

    in_itemsize = jnp.dtype(x3.dtype).itemsize
    out_itemsize = jnp.dtype(out_dtype).itemsize

    # --- Spatial (lane) tile ------------------------------------------------
    # Full H*W whenever a single-image (C_in, HW) slab fits the block budget
    # (block == full dim, so any HW such as 196 is legal).  Otherwise a
    # 128-aligned tile; the ragged last spatial tile is masked by Pallas on
    # writeback -- no wrapper pad / slice copies.
    max_thw = max(128, (target_block_bytes // max(1, C_in * in_itemsize)) // 128 * 128)
    thw = HW if HW <= max_thw else max_thw
    n_hw = pl.cdiv(HW, thw)

    # --- Batch tile -----------------------------------------------------------
    # Fixed tile sized from the block-byte budget; no divisor requirement --
    # cdiv grid + masked partial last block handles arbitrary (odd/prime) N.
    per_image_bytes = C_in * thw * in_itemsize
    if batch_tile is not None:
        tn = max(1, min(N, int(batch_tile)))
    else:
        tn = max(1, min(N, target_block_bytes // max(1, per_image_bytes)))
        # Only on multi-TensorCore chips: make sure both cores get work.
        if multi_tc and (pl.cdiv(N, tn) * n_hw) < 2 and N >= 2:
            tn = pl.cdiv(N, 2)
    nb = pl.cdiv(N, tn)
    grid = (nb, n_hw)

    # --- VMEM budget / cost hint ---------------------------------------------
    in_block = tn * C_in * thw * in_itemsize
    out_block = tn * C_out * thw * out_itemsize
    w_bytes = C_out * C_in * in_itemsize
    required = 2 * in_block + 2 * out_block + 2 * w_bytes + 2 * C_out * 4 + (2 << 20)
    vmem_limit = int(min(max(required, 32 << 20), 64 << 20))

    flops = 2 * N * C_out * C_in * HW
    bytes_accessed = (N * C_in * HW * in_itemsize
                      + w_bytes + C_out * 4
                      + N * C_out * HW * out_itemsize)

    out3 = pl.pallas_call(
        _conv1x1_kernel,
        out_shape=jax.ShapeDtypeStruct((N, C_out, HW), out_dtype),
        grid_spec=pltpu.PrefetchScalarGridSpec(
            num_scalar_prefetch=0,
            grid=grid,
            in_specs=[
                pl.BlockSpec((C_out, C_in), lambda bi, si: (0, 0)),        # weight (resident)
                pl.BlockSpec((tn, C_in, thw), lambda bi, si: (bi, 0, si)),  # activations
                pl.BlockSpec((C_out, 1), lambda bi, si: (0, 0)),            # bias (resident)
            ],
            out_specs=pl.BlockSpec((tn, C_out, thw), lambda bi, si: (bi, 0, si)),
        ),
        compiler_params=pltpu.CompilerParams(
            dimension_semantics=("parallel", "parallel"),
            vmem_limit_bytes=vmem_limit,
        ),
        cost_estimate=pl.CostEstimate(
            flops=flops, transcendentals=0, bytes_accessed=bytes_accessed),
    )(w, x3, b)

    return out3.reshape(N, C_out, H, W)


def mask_rcnn_conv1x1_predictor(x_nchw, weight_oihw, bias, **kwargs):
    """Forward pass of MaskRCNNConv1x1Predictor (the mask_fcn_logits 1x1 conv)."""
    return conv1x1_nchw(x_nchw, weight_oihw, bias, **kwargs)


def init_params(key, in_channels, num_classes, dtype=jnp.float32):
    """Matches the module's __init__:
    - weight: kaiming_normal_(mode='fan_out', nonlinearity='relu');
              fan_out = num_classes * 1 * 1, std = sqrt(2 / fan_out)
    - bias:   zeros
    """
    fan_out = num_classes * 1 * 1
    std = math.sqrt(2.0 / fan_out)
    weight = std * jax.random.normal(key, (num_classes, in_channels, 1, 1), dtype)
    bias = jnp.zeros((num_classes,), dtype)
    return weight, bias


# --------------------------------------------------------------------------- #
# Demo / correctness check                                                    #
# --------------------------------------------------------------------------- #
if __name__ == "__main__":
    # Small shapes consistent with the module: mask-head features are
    # (num_rois, in_channels, H, W); num_classes from cfg.
    N, C_IN, H, W = 2, 4, 16, 16
    NUM_CLASSES = 8

    key = jax.random.PRNGKey(0)
    k_x, k_w, k_x2 = jax.random.split(key, 3)

    x = jax.random.normal(k_x, (N, C_IN, H, W), jnp.float32)
    weight, bias = init_params(k_w, C_IN, NUM_CLASSES)

    w2d = weight.reshape(NUM_CLASSES, C_IN)
    ref = jnp.einsum("nchw,oc->nohw", x, w2d) + bias.reshape(1, NUM_CLASSES, 1, 1)

    # Default path: bf16 compute (memory-bound op -> halves HBM read bytes),
    # f32 accumulation + f32 output.  Logits match the f32 reference at bf16
    # tolerance.
    out_bf16 = jax.block_until_ready(mask_rcnn_conv1x1_predictor(x, weight, bias))
    assert out_bf16.shape == (N, NUM_CLASSES, H, W)
    assert jnp.allclose(out_bf16, ref, atol=5e-2, rtol=5e-2)

    # Exact f32 compute path.
    out_f32 = jax.block_until_ready(
        mask_rcnn_conv1x1_predictor(x, weight, bias, compute_dtype=jnp.float32))
    assert jnp.allclose(out_f32, ref, atol=1e-5, rtol=1e-5)

    # Ragged batch: N=5 with batch_tile=2 exercises the cdiv grid + masked
    # partial last block (odd ROI counts no longer force a divisor tile).
    N2 = 5
    x2 = jax.random.normal(k_x2, (N2, C_IN, H, W), jnp.float32)
    ref2 = jnp.einsum("nchw,oc->nohw", x2, w2d) + bias.reshape(1, NUM_CLASSES, 1, 1)
    out2 = jax.block_until_ready(
        conv1x1_nchw(x2, weight, bias, compute_dtype=jnp.float32, batch_tile=2))
    assert out2.shape == (N2, NUM_CLASSES, H, W)
    assert jnp.allclose(out2, ref2, atol=1e-5, rtol=1e-5)

    print("KERNEL_OK")
</pallas_src>

<mosaic_0001>
module attributes {stable_mosaic.version = 11 : i64} {
  func.func @_conv1x1_kernel(%arg0: i32, %arg1: i32, %arg2: memref<8x4xbf16, #tpu.memory_space<vmem>>, %arg3: memref<2x4x256xbf16, #tpu.memory_space<vmem>>, %arg4: memref<8x1xf32, #tpu.memory_space<vmem>>, %arg5: memref<2x8x256xf32, #tpu.memory_space<vmem>>) attributes {dimension_semantics = [#tpu.dimension_semantics<parallel>, #tpu.dimension_semantics<parallel>], iteration_bounds = array<i64: 1, 1>, scalar_prefetch = 0 : i64, scratch_operands = 0 : i64, tpu.core_type = #tpu.core_type<tc>, window_params = [{pipeline_mode = #tpu.pipeline_mode<synchronous>, transform_indices = @transform_0, window_bounds = array<i64: 8, 4>}, {transform_indices = @transform_1, window_bounds = array<i64: 2, 4, 256>}, {pipeline_mode = #tpu.pipeline_mode<synchronous>, transform_indices = @transform_2, window_bounds = array<i64: 8, 1>}, {transform_indices = @transform_3, window_bounds = array<i64: 2, 8, 256>}]} {
    %c0 = arith.constant 0 : index
    %c0_0 = arith.constant 0 : index
    %0 = vector.load %arg2[%c0, %c0_0] : memref<8x4xbf16, #tpu.memory_space<vmem>>, vector<8x4xbf16>
    %c0_1 = arith.constant 0 : index
    %c0_2 = arith.constant 0 : index
    %1 = vector.load %arg4[%c0_1, %c0_2] : memref<8x1xf32, #tpu.memory_space<vmem>>, vector<8x1xf32>
    %2 = vector.shape_cast %1 : vector<8x1xf32> to vector<8x1xf32>
    %3 = vector.broadcast %2 : vector<8x1xf32> to vector<8x256xf32>
    %c0_i32 = arith.constant 0 : i32
    %c2_i32 = arith.constant 2 : i32
    %4 = arith.addi %c0_i32, %c2_i32 : i32
    %c1_i32 = arith.constant 1 : i32
    scf.for %arg6 = %c0_i32 to %4 step %c1_i32  : i32 {
      %5 = arith.index_cast %arg6 : i32 to index
      %c0_4 = arith.constant 0 : index
      %c0_5 = arith.constant 0 : index
      %6 = vector.load %arg3[%5, %c0_4, %c0_5] : memref<2x4x256xbf16, #tpu.memory_space<vmem>>, vector<1x4x256xbf16>
      %7 = vector.shape_cast %6 : vector<1x4x256xbf16> to vector<4x256xbf16>
      %cst = arith.constant dense<0.000000e+00> : vector<8x256xf32>
      %8 = tpu.matmul %0, %7, %cst {dimension_numbers = #tpu.dot_dimension_numbers<[1], [0], [0], [1], [0, 0, 1, 1], [], []>} : vector<8x4xbf16>, vector<4x256xbf16>, vector<8x256xf32> -> vector<8x256xf32>
      %9 = arith.addf %8, %3 : vector<8x256xf32>
      %10 = arith.index_cast %arg6 : i32 to index
      %c0_6 = arith.constant 0 : index
      %c0_7 = arith.constant 0 : index
      %11 = vector.load %arg5[%10, %c0_6, %c0_7] : memref<2x8x256xf32, #tpu.memory_space<vmem>>, vector<1x8x256xf32>
      %12 = vector.shape_cast %11 : vector<1x8x256xf32> to vector<8x256xf32>
      %13 = vector.shape_cast %9 : vector<8x256xf32> to vector<1x8x256xf32>
      tpu.vector_store %arg5[%10, %c0_6, %c0_7], %13 {strides = array<i32>} : memref<2x8x256xf32, #tpu.memory_space<vmem>>, vector<1x8x256xf32>,
    }
    %c2_i32_3 = arith.constant 2 : i32
    return
  }
  func.func @transform_0(%arg0: i32, %arg1: i32) -> (i32, i32) {
    %c0_i32 = arith.constant 0 : i32
    %c0_i32_0 = arith.constant 0 : i32
    %c0_i32_1 = arith.constant 0 : i32
    return %c0_i32, %c0_i32_0 : i32, i32
  }
  func.func @transform_1(%arg0: i32, %arg1: i32) -> (i32, i32, i32) {
    %c0_i32 = arith.constant 0 : i32
    %c0_i32_0 = arith.constant 0 : i32
    return %arg0, %c0_i32, %arg1 : i32, i32, i32
  }
  func.func @transform_2(%arg0: i32, %arg1: i32) -> (i32, i32) {
    %c0_i32 = arith.constant 0 : i32
    %c0_i32_0 = arith.constant 0 : i32
    %c0_i32_1 = arith.constant 0 : i32
    return %c0_i32, %c0_i32_0 : i32, i32
  }
  func.func @transform_3(%arg0: i32, %arg1: i32) -> (i32, i32, i32) {
    %c0_i32 = arith.constant 0 : i32
    %c0_i32_0 = arith.constant 0 : i32
    return %arg0, %c0_i32, %arg1 : i32, i32, i32
  }
}

</mosaic_0001>

<llo_original>
// kernel: tpu_custom_call.1
$region0: #{tpu_custom_call.1}
  #allocation0 [shape = 'u32[]', space=smem, size = 0x4, offset = 0x4, fixed_abs, tag = 'smem constant byte address 0x4 - core index']
  #allocation1 [shape = 'u32[144,128]{1,0:T(1,128)}', space=vmem, size = 0x12000, scoped, tag = 'internal scratch']
  %s0 = inlined_call_operand.vmem [shape: bf16[8,4], index: 0, kind: input, shape index: {}]
  %s1 = inlined_call_operand.vmem [shape: bf16[2,4,256], index: 1, kind: input, shape index: {}]
  %s2 = inlined_call_operand.vmem [shape: f32[8,1], index: 2, kind: input, shape index: {}]
  %s3 = inlined_call_operand.hbm [shape: f32[2,8,256], index: 3, kind: output, shape index: {}]
  %s4 = sld [smem:[#allocation0]]
  $region29: #{tpu_custom_call.1} parent=0
    _
  %s6 = ssub.s32 1, %s4
  %s7 = scalar_select 0, %s6, %s4
  $region1: #{tpu_custom_call.1} parent=0
    #allocation2 [shape = 'u8[16384]{0}', space=vmem, size = 0x4000, scoped, tag = 'output window, operand 0, single buffered']
    #allocation3 [shape = 's32[1]{0}', space=sflag, size = 0x4, scoped, tag = 'scoped memory for tpu_custom_call.1']
    %8 = vsyncpa [#allocation3], 0
    // Predicated region
    $region2: #{tpu_custom_call.1} parent=1 // pred_check
      _
    $region3: #{tpu_custom_call.1} parent=1 // pred_check_branch
      %10 = sbr.rel (0) target = $region5
    $region4: #{tpu_custom_call.1} parent=1 // pred_region
      _
    $region5: #{tpu_custom_call.1} parent=1 // pred_fallthru
      _
    // Predicated region
    $region6: #{tpu_custom_call.1} parent=1 // pred_check
      _
    $region7: #{tpu_custom_call.1} parent=1 // pred_check_branch
      %12 = sbr.rel (0) target = $region9
    $region8: #{tpu_custom_call.1} parent=1 // pred_region
      _
    $region9: #{tpu_custom_call.1} parent=1 // pred_fallthru
      _
    // Predicated region
    $region10: #{tpu_custom_call.1} parent=1 // pred_check
      _
    $region11: #{tpu_custom_call.1} parent=1 // pred_check_branch
      %14 = sbr.rel (0) target = $region13
    $region12: #{tpu_custom_call.1} parent=1 // pred_region
      _
    $region13: #{tpu_custom_call.1} parent=1 // pred_fallthru
      _
    %v16 = vld [vmem:[%s0] sm:$0xf]
    %v17 = vld [vmem:[%s2] sm:$0xff]
    %19 = vset.pattern.permute.xlu0 0
    %20 = vperm.xlu0 %19, %v17
    %v21 = vpop.permute.xlu0 %20
    loop: start=0, step=1, limit=2
    $region14: #{tpu_custom_call.1} parent=1 // loop_pre_header
      _
    $region15: #{tpu_custom_call.1} parent=1 // loop_header
      %s24 = sphi 0, %s28
      %p25 = scmp.ge.s32.totalorder %s24, 2
    $region16: #{tpu_custom_call.1} parent=1 // loop_header_branch
      %27 = sbr.rel (%p25) target = $region20
    $region17: #{tpu_custom_call.1} parent=1 // loop_body
      %s29 = smul.u32 %s24, 2
      %s30 = smul.addr %s29, 2
      %s31 = scalar_lea.vmem %s1, %s30
      %v32 = vld [vmem:[%s31] sm:$0xf]
      %v35 = vunpack.c.l.s4 1983009808
      %v36 = vunpack.c.0.s8 %v35
      %v37 = vlaneseq
      %v38 = vshrl.u32 %v37, 7
      %v39 = vsub.s32 %v36, %v38
      %v40 = vrot.slane %v32, %v39
      %v41 = vcombine.high %v40, %v40
      %vm42 = vcmask 31744
      %v44 = vsel %vm42, %v16, 0
      %vm46 = vcmask 1041408
      %v48 = vsel %vm46, %v40, 0
      %v51 = vsel %vm46, %v41, 0
      %53 = vmatprep.subr.bf16.mxu0 %v51
      %54 = vmatpush1.bf16.msra.mxu0 %v48
      %55 = vmatprep.subr.bf16.mxu0 0
      %56 = vmatpush1.bf16.msra.mxu0 0
      %57 = vmatprep.subr.bf16.mxu0 0
      %58 = vmatpush1.bf16.msra.mxu0 0
      %59 = vmatprep.subr.bf16.mxu0 0
      %60 = vmatpush1.bf16.msra.mxu0 0
      %61 = vmatprep.subr.bf16.mxu0 0
      %62 = vmatpush1.bf16.msra.mxu0 0
      %63 = vmatprep.subr.bf16.mxu0 0
      %64 = vmatpush1.bf16.msra.mxu0 0
      %65 = vmatprep.subr.bf16.mxu0 0
      %66 = vmatpush1.bf16.msra.mxu0 0
      %67 = vmatprep.subr.bf16.mxu0 0
      %68 = vmatpush1.bf16.msra.mxu0 0
      %69 = vmatprep.subr.bf16.mxu0 0
      %70 = vmatpush1.bf16.msra.mxu0 0
      %71 = vmatprep.subr.bf16.mxu0 0
      %72 = vmatpush1.bf16.msra.mxu0 0
      %73 = vmatprep.subr.bf16.mxu0 0
      %74 = vmatpush1.bf16.msra.mxu0 0
      %75 = vmatprep.subr.bf16.mxu0 0
      %76 = vmatpush1.bf16.msra.mxu0 0
      %77 = vmatprep.subr.bf16.mxu0 0
      %78 = vmatpush1.bf16.msra.mxu0 0
      %79 = vmatprep.subr.bf16.mxu0 0
      %80 = vmatpush1.bf16.msra.mxu0 0
      %81 = vmatprep.subr.bf16.mxu0 0
      %82 = vmatpush1.bf16.msra.mxu0 0
      %83 = vmatprep.subr.bf16.mxu0 0
      %84 = vmatpush1.bf16.msra.mxu0 0
      %85 = vmatprep.mubr.bf16.mxu0 0
      %86 = vmatmul.mubr.bf16.gmra.mrb[0].mxu0 %v44
      %v87 = vpop.f32.mrb[0].mxu0
      %v88 = vadd.f32 %v21, %v87
      %v89 = vpop.f32.mrb[0].mxu0
      %v90 = vadd.f32 %v21, %v89
      %v91 = vpop.f32.mrb[0].mxu0
      %v92 = vpop.f32.mrb[0].mxu0
      %93 = vdwg.mxu0
      %s94 = smul.addr %s29, 8
      %s95 = scalar_lea.vmem [#allocation2], %s94
      %96 = vst [vmem:[%s95] sm:$0xff] %v88
      %97 = vst [vmem:[%s95 + $0x8] sm:$0xff] %v90
    $region18: #{tpu_custom_call.1} parent=1 // loop_footer
      %s28 = sadd.s32 1, %s24
    $region19: #{tpu_custom_call.1} parent=1 // loop_footer_branch
      %23 = sbr.rel target = $region15
    $region20: #{tpu_custom_call.1} parent=1 // loop_exit
      _
    // Predicated region
    $region21: #{tpu_custom_call.1} parent=1 // pred_check
      _
    $region22: #{tpu_custom_call.1} parent=1 // pred_check_branch
      %99 = sbr.rel (0) target = $region24
    $region23: #{tpu_custom_call.1} parent=1 // pred_region
      %s101 = ssub.s32 512, 512
      %102 = vsyncadd [#allocation3], %s101
      %s103 = sshll.u32 [#allocation2], 4
      %s104 = int_to_ptr.vmem [resolvable:$true] %s103
      %109 = dma.vmem_to_hbm [thread:$0]  %s104, 512, %s3, [#allocation3], 256, 256, 16
    $region24: #{tpu_custom_call.1} parent=1 // pred_fallthru
      _
    // Predicated region
    $region25: #{tpu_custom_call.1} parent=1 // pred_check
      _
    $region26: #{tpu_custom_call.1} parent=1 // pred_check_branch
      %111 = sbr.rel (0) target = $region28
    $region27: #{tpu_custom_call.1} parent=1 // pred_region
      %112 = dma.done [#allocation3], 512
    $region28: #{tpu_custom_call.1} parent=1 // pred_fallthru
      _
    %113 = vsyncpa [#allocation3], 1

</llo_original>
